<compile_context>
chip_gen: v5e
topology: v5e:2x2
jax: 0.10.0
libtpu: 0.0.40
codegen_flags: <defaults>
</compile_context>

<pallas_src>
import jax
import jax.numpy as jnp
from jax.experimental import pallas as pl
from jax.experimental.pallas import tpu as pltpu

D_IN, D_H1, D_H2, D_OUT = 256, 256, 128, 50
D_OUT_PAD = 128      # lane-dense padded output width (unmasked stores)
MAX_TILE_B = 1024    # max batch rows per grid step (~86% of HBM roofline)


def _cdiv(a, b):
    return (a + b - 1) // b


def _round_up(a, b):
    return _cdiv(a, b) * b


def _choose_tile(batch, max_tile=MAX_TILE_B):
    """Adaptive batch tile.

    Tiny batches pad only to a multiple of 16 (bf16 sublane packing); larger
    batches target >=2 grid steps (v7x has 2 TensorCores; on v5e/v6e the
    extra step is harmless) with at most `max_tile` rows per step.
    """
    if batch <= 32:
        return _round_up(batch, 16)
    n_steps = max(2, _cdiv(batch, max_tile))
    return min(max_tile, _round_up(_cdiv(batch, n_steps), 16))


def mlp_kernel(x_ref, w1_ref, b1_ref, w2_ref, b2_ref, w3_ref, b3_ref, o_ref):
    # fc1: Linear(256->256) + ReLU. x arrives f32 straight from HBM and is
    # cast to bf16 here (no separate wrapper cast pass); MXU accumulates f32.
    x = x_ref[...].astype(jnp.bfloat16)
    h1 = jnp.dot(x, w1_ref[...], preferred_element_type=jnp.float32)
    h1 = jnp.maximum(h1 + b1_ref[...], 0.0)
    # fc2: Linear(256->128) + ReLU
    h2 = jnp.dot(h1.astype(jnp.bfloat16), w2_ref[...],
                 preferred_element_type=jnp.float32)
    h2 = jnp.maximum(h2 + b2_ref[...], 0.0)
    # fc3: Linear(128->128 padded) + Sigmoid (cols 50..127 are zero weights).
    z = jnp.dot(h2.astype(jnp.bfloat16), w3_ref[...],
                preferred_element_type=jnp.float32)
    z = z + b3_ref[...]
    # f32 elementwise epilogue, bf16 writeback (halves output HBM traffic).
    o_ref[...] = jax.nn.sigmoid(z).astype(o_ref.dtype)


def prepare_params(params):
    """One-time parameter prep, hoisted out of the per-call path:
    pad fc3 to a full 128-lane slab and cast weights to bf16 (biases stay f32,
    stored as (1, D) rows for in-kernel broadcast)."""
    w1, b1, w2, b2, w3, b3 = params
    bf16 = jnp.bfloat16
    w3p = jnp.pad(w3, ((0, 0), (0, D_OUT_PAD - D_OUT)))
    b3p = jnp.pad(b3, ((0, 0), (0, D_OUT_PAD - D_OUT)))
    return (w1.astype(bf16), b1, w2.astype(bf16), b2, w3p.astype(bf16), b3p)


def classifier_forward(x, prepared_params, *, max_tile=MAX_TILE_B):
    """x: (B, 256) float32; prepared_params from prepare_params().
    Returns (B, 50) float32 (matches the PyTorch module)."""
    w1b, b1, w2b, b2, w3b, b3p = prepared_params
    B = x.shape[0]

    tile_b = _choose_tile(B, max_tile)
    n_tiles = _cdiv(B, tile_b)
    B_pad = n_tiles * tile_b
    if B_pad != B:
        x = jnp.pad(x, ((0, B_pad - B), (0, 0)))

    # Constant-index weight specs: each weight is fetched into VMEM once and
    # stays resident across the whole grid (double-buffer cost ~450 KiB,
    # negligible against the 32 MiB budget, so default buffering is kept).
    full = lambda shape: pl.BlockSpec(shape, lambda i: (0,) * len(shape))

    out = pl.pallas_call(
        mlp_kernel,
        out_shape=jax.ShapeDtypeStruct((B_pad, D_OUT_PAD), jnp.bfloat16),
        grid=(n_tiles,),
        in_specs=[
            pl.BlockSpec((tile_b, D_IN), lambda i: (i, 0)),  # x tile (f32)
            full((D_IN, D_H1)),        # w1 bf16
            full((1, D_H1)),           # b1 f32
            full((D_H1, D_H2)),        # w2 bf16
            full((1, D_H2)),           # b2 f32
            full((D_H2, D_OUT_PAD)),   # w3 padded, bf16
            full((1, D_OUT_PAD)),      # b3 padded, f32
        ],
        out_specs=pl.BlockSpec((tile_b, D_OUT_PAD), lambda i: (i, 0)),
        compiler_params=pltpu.CompilerParams(
            dimension_semantics=("parallel",),
            vmem_limit_bytes=32 * 1024 * 1024,
        ),
    )(x, w1b, b1, w2b, b2, w3b, b3p)

    # Drop batch padding and padded output lanes; return f32 like PyTorch.
    return out[:B, :D_OUT].astype(jnp.float32)


def init_params(key):
    """Deterministic init mimicking nn.Linear default: U(-1/sqrt(fan_in), +)."""
    def linear(key, fan_in, fan_out):
        kw, kb = jax.random.split(key)
        bound = 1.0 / jnp.sqrt(fan_in)
        # stored as (in, out) so the kernel computes x @ W
        w = jax.random.uniform(kw, (fan_in, fan_out), jnp.float32, -bound, bound)
        b = jax.random.uniform(kb, (1, fan_out), jnp.float32, -bound, bound)
        return w, b

    k1, k2, k3 = jax.random.split(key, 3)
    w1, b1 = linear(k1, D_IN, D_H1)
    w2, b2 = linear(k2, D_H1, D_H2)
    w3, b3 = linear(k3, D_H2, D_OUT)
    return (w1, b1, w2, b2, w3, b3)


def reference_forward_bf16(x, params):
    """Reference with the same bf16-matmul / f32-accumulate recipe as the kernel."""
    w1, b1, w2, b2, w3, b3 = params
    bf16 = jnp.bfloat16
    h1 = jnp.dot(x.astype(bf16), w1.astype(bf16),
                 preferred_element_type=jnp.float32) + b1
    h1 = jnp.maximum(h1, 0.0)
    h2 = jnp.dot(h1.astype(bf16), w2.astype(bf16),
                 preferred_element_type=jnp.float32) + b2
    h2 = jnp.maximum(h2, 0.0)
    z = jnp.dot(h2.astype(bf16), w3.astype(bf16),
                preferred_element_type=jnp.float32) + b3
    return jax.nn.sigmoid(z)


def reference_forward_f32(x, params):
    w1, b1, w2, b2, w3, b3 = params
    h1 = jnp.maximum(x @ w1 + b1, 0.0)
    h2 = jnp.maximum(h1 @ w2 + b2, 0.0)
    return jax.nn.sigmoid(h2 @ w3 + b3)


if __name__ == "__main__":
    key = jax.random.PRNGKey(0)
    kx, kp = jax.random.split(key)
    batch = 20  # not a multiple of 16 -> exercises the batch-padding path
    x = jax.random.normal(kx, (batch, D_IN), jnp.float32)
    params = init_params(kp)
    prepared = prepare_params(params)   # one-time: pad fc3 + bf16 casts

    fwd = jax.jit(classifier_forward)
    out = jax.block_until_ready(fwd(x, prepared))
    assert out.shape == (batch, D_OUT)

    # Tight check vs. a reference using the identical bf16-matmul recipe
    # (kernel additionally rounds the sigmoid output to bf16: <~4e-3 abs).
    ref_bf16 = reference_forward_bf16(x, params)
    assert jnp.allclose(out, ref_bf16, atol=2e-2, rtol=2e-2)

    # Coarser semantic check vs. the full f32 PyTorch-equivalent forward.
    ref_f32 = reference_forward_f32(x, params)
    assert jnp.max(jnp.abs(out - ref_f32)) < 5e-2

    print("KERNEL_OK")
</pallas_src>

<mosaic_0001>
module attributes {stable_mosaic.version = 11 : i64} {
  func.func @mlp_kernel(%arg0: i32, %arg1: memref<32x256xf32, #tpu.memory_space<vmem>>, %arg2: memref<256x256xbf16, #tpu.memory_space<vmem>>, %arg3: memref<1x256xf32, #tpu.memory_space<vmem>>, %arg4: memref<256x128xbf16, #tpu.memory_space<vmem>>, %arg5: memref<1x128xf32, #tpu.memory_space<vmem>>, %arg6: memref<128x128xbf16, #tpu.memory_space<vmem>>, %arg7: memref<1x128xf32, #tpu.memory_space<vmem>>, %arg8: memref<32x128xbf16, #tpu.memory_space<vmem>>) attributes {dimension_semantics = [#tpu.dimension_semantics<parallel>], iteration_bounds = array<i64: 1>, scalar_prefetch = 0 : i64, scratch_operands = 0 : i64, tpu.core_type = #tpu.core_type<tc>, window_params = [{transform_indices = @transform_0, window_bounds = array<i64: 32, 256>}, {pipeline_mode = #tpu.pipeline_mode<synchronous>, transform_indices = @transform_1, window_bounds = array<i64: 256, 256>}, {pipeline_mode = #tpu.pipeline_mode<synchronous>, transform_indices = @transform_2, window_bounds = array<i64: 1, 256>}, {pipeline_mode = #tpu.pipeline_mode<synchronous>, transform_indices = @transform_3, window_bounds = array<i64: 256, 128>}, {pipeline_mode = #tpu.pipeline_mode<synchronous>, transform_indices = @transform_4, window_bounds = array<i64: 1, 128>}, {pipeline_mode = #tpu.pipeline_mode<synchronous>, transform_indices = @transform_5, window_bounds = array<i64: 128, 128>}, {pipeline_mode = #tpu.pipeline_mode<synchronous>, transform_indices = @transform_6, window_bounds = array<i64: 1, 128>}, {transform_indices = @transform_7, window_bounds = array<i64: 32, 128>}]} {
    %c0 = arith.constant 0 : index
    %c0_0 = arith.constant 0 : index
    %0 = vector.load %arg1[%c0, %c0_0] : memref<32x256xf32, #tpu.memory_space<vmem>>, vector<32x256xf32>
    %1 = arith.truncf %0 : vector<32x256xf32> to vector<32x256xbf16>
    %c0_1 = arith.constant 0 : index
    %c0_2 = arith.constant 0 : index
    %2 = vector.load %arg2[%c0_1, %c0_2] : memref<256x256xbf16, #tpu.memory_space<vmem>>, vector<256x256xbf16>
    %cst = arith.constant dense<0.000000e+00> : vector<32x256xf32>
    %3 = tpu.matmul %1, %2, %cst {dimension_numbers = #tpu.dot_dimension_numbers<[1], [0], [0], [1], [0, 0, 1, 1], [], []>} : vector<32x256xbf16>, vector<256x256xbf16>, vector<32x256xf32> -> vector<32x256xf32>
    %c0_3 = arith.constant 0 : index
    %c0_4 = arith.constant 0 : index
    %4 = vector.load %arg3[%c0_3, %c0_4] : memref<1x256xf32, #tpu.memory_space<vmem>>, vector<1x256xf32>
    %5 = vector.broadcast %4 : vector<1x256xf32> to vector<32x256xf32>
    %6 = arith.addf %3, %5 : vector<32x256xf32>
    %cst_5 = arith.constant 0.000000e+00 : f32
    %7 = vector.broadcast %cst_5 : f32 to vector<32x256xf32>
    %8 = arith.maximumf %6, %7 : vector<32x256xf32>
    %9 = arith.truncf %8 : vector<32x256xf32> to vector<32x256xbf16>
    %c0_6 = arith.constant 0 : index
    %c0_7 = arith.constant 0 : index
    %10 = vector.load %arg4[%c0_6, %c0_7] : memref<256x128xbf16, #tpu.memory_space<vmem>>, vector<256x128xbf16>
    %cst_8 = arith.constant dense<0.000000e+00> : vector<32x128xf32>
    %11 = tpu.matmul %9, %10, %cst_8 {dimension_numbers = #tpu.dot_dimension_numbers<[1], [0], [0], [1], [0, 0, 1, 1], [], []>} : vector<32x256xbf16>, vector<256x128xbf16>, vector<32x128xf32> -> vector<32x128xf32>
    %c0_9 = arith.constant 0 : index
    %c0_10 = arith.constant 0 : index
    %12 = vector.load %arg5[%c0_9, %c0_10] : memref<1x128xf32, #tpu.memory_space<vmem>>, vector<1x128xf32>
    %13 = vector.broadcast %12 : vector<1x128xf32> to vector<32x128xf32>
    %14 = arith.addf %11, %13 : vector<32x128xf32>
    %cst_11 = arith.constant 0.000000e+00 : f32
    %15 = vector.broadcast %cst_11 : f32 to vector<32x128xf32>
    %16 = arith.maximumf %14, %15 : vector<32x128xf32>
    %17 = arith.truncf %16 : vector<32x128xf32> to vector<32x128xbf16>
    %c0_12 = arith.constant 0 : index
    %c0_13 = arith.constant 0 : index
    %18 = vector.load %arg6[%c0_12, %c0_13] : memref<128x128xbf16, #tpu.memory_space<vmem>>, vector<128x128xbf16>
    %cst_14 = arith.constant dense<0.000000e+00> : vector<32x128xf32>
    %19 = tpu.matmul %17, %18, %cst_14 {dimension_numbers = #tpu.dot_dimension_numbers<[1], [0], [0], [1], [0, 0, 1, 1], [], []>} : vector<32x128xbf16>, vector<128x128xbf16>, vector<32x128xf32> -> vector<32x128xf32>
    %c0_15 = arith.constant 0 : index
    %c0_16 = arith.constant 0 : index
    %20 = vector.load %arg7[%c0_15, %c0_16] : memref<1x128xf32, #tpu.memory_space<vmem>>, vector<1x128xf32>
    %21 = vector.broadcast %20 : vector<1x128xf32> to vector<32x128xf32>
    %22 = arith.addf %19, %21 : vector<32x128xf32>
    %23 = arith.negf %22 : vector<32x128xf32>
    %24 = math.exp %23 : vector<32x128xf32>
    %cst_17 = arith.constant 1.000000e+00 : f32
    %25 = vector.broadcast %cst_17 : f32 to vector<32x128xf32>
    %26 = arith.addf %25, %24 : vector<32x128xf32>
    %27 = arith.divf %25, %26 : vector<32x128xf32>
    %28 = arith.truncf %27 : vector<32x128xf32> to vector<32x128xbf16>
    %c0_18 = arith.constant 0 : index
    %c0_19 = arith.constant 0 : index
    %29 = vector.load %arg8[%c0_18, %c0_19] : memref<32x128xbf16, #tpu.memory_space<vmem>>, vector<32x128xbf16>
    tpu.vector_store %arg8[%c0_18, %c0_19], %28 {strides = array<i32>} : memref<32x128xbf16, #tpu.memory_space<vmem>>, vector<32x128xbf16>,
    return
  }
  func.func @transform_0(%arg0: i32) -> (i32, i32) {
    %c0_i32 = arith.constant 0 : i32
    %c0_i32_0 = arith.constant 0 : i32
    return %arg0, %c0_i32 : i32, i32
  }
  func.func @transform_1(%arg0: i32) -> (i32, i32) {
    %c0_i32 = arith.constant 0 : i32
    %c0_i32_0 = arith.constant 0 : i32
    %c0_i32_1 = arith.constant 0 : i32
    return %c0_i32, %c0_i32_0 : i32, i32
  }
  func.func @transform_2(%arg0: i32) -> (i32, i32) {
    %c0_i32 = arith.constant 0 : i32
    %c0_i32_0 = arith.constant 0 : i32
    %c0_i32_1 = arith.constant 0 : i32
    return %c0_i32, %c0_i32_0 : i32, i32
  }
  func.func @transform_3(%arg0: i32) -> (i32, i32) {
    %c0_i32 = arith.constant 0 : i32
    %c0_i32_0 = arith.constant 0 : i32
    %c0_i32_1 = arith.constant 0 : i32
    return %c0_i32, %c0_i32_0 : i32, i32
  }
  func.func @transform_4(%arg0: i32) -> (i32, i32) {
    %c0_i32 = arith.constant 0 : i32
    %c0_i32_0 = arith.constant 0 : i32
    %c0_i32_1 = arith.constant 0 : i32
    return %c0_i32, %c0_i32_0 : i32, i32
  }
  func.func @transform_5(%arg0: i32) -> (i32, i32) {
    %c0_i32 = arith.constant 0 : i32
    %c0_i32_0 = arith.constant 0 : i32
    %c0_i32_1 = arith.constant 0 : i32
    return %c0_i32, %c0_i32_0 : i32, i32
  }
  func.func @transform_6(%arg0: i32) -> (i32, i32) {
    %c0_i32 = arith.constant 0 : i32
    %c0_i32_0 = arith.constant 0 : i32
    %c0_i32_1 = arith.constant 0 : i32
    return %c0_i32, %c0_i32_0 : i32, i32
  }
  func.func @transform_7(%arg0: i32) -> (i32, i32) {
    %c0_i32 = arith.constant 0 : i32
    %c0_i32_0 = arith.constant 0 : i32
    return %arg0, %c0_i32 : i32, i32
  }
}

</mosaic_0001>

<llo_original>
// kernel: classifier_forward.1
$region0: #{classifier_forward.1}
  #allocation0 [shape = 'u32[]', space=smem, size = 0x4, offset = 0x4, fixed_abs, tag = 'smem constant byte address 0x4 - core index']
  #allocation1 [shape = 'u32[72,128]{1,0:T(1,128)}', space=vmem, size = 0x9000, scoped, tag = 'internal scratch']
  %s0 = inlined_call_operand.vmem [shape: f32[32,256], index: 0, kind: input, shape index: {}]
  %s1 = inlined_call_operand.hbm [shape: bf16[256,256], index: 1, kind: input, shape index: {}]
  %s2 = inlined_call_operand.vmem [shape: f32[1,256], index: 2, kind: input, shape index: {}]
  %s3 = inlined_call_operand.hbm [shape: bf16[256,128], index: 3, kind: input, shape index: {}]
  %s4 = inlined_call_operand.vmem [shape: f32[1,128], index: 4, kind: input, shape index: {}]
  %s5 = inlined_call_operand.vmem [shape: bf16[128,128], index: 5, kind: input, shape index: {}]
  %s6 = inlined_call_operand.vmem [shape: f32[1,128], index: 6, kind: input, shape index: {}]
  %s7 = inlined_call_operand.vmem [shape: bf16[32,128], index: 7, kind: output, shape index: {}]
  %s8 = sld [smem:[#allocation0]]
  $region46: #{classifier_forward.1} parent=0
    _
  %s10 = ssub.s32 1, %s8
  %s11 = scalar_select 0, %s10, %s8
  $region1: #{classifier_forward.1} parent=0
    #allocation2 [shape = 'u8[131072]{0}', space=vmem, size = 0x20000, scoped, tag = 'input window, operand 1, single buffered']
    #allocation3 [shape = 's32[1]{0}', space=sflag, size = 0x4, scoped, tag = 'scoped memory for classifier_forward.1']
    #allocation4 [shape = 'u8[65536]{0}', space=vmem, size = 0x10000, scoped, tag = 'input window, operand 3, single buffered']
    #allocation5 [shape = 's32[1]{0}', space=sflag, size = 0x4, scoped, tag = 'scoped memory for classifier_forward.1']
    %12 = vsyncpa [#allocation3], 0
    %13 = vsyncpa [#allocation5], 0
    // Predicated region
    $region2: #{classifier_forward.1} parent=1 // pred_check
      _
    $region3: #{classifier_forward.1} parent=1 // pred_check_branch
      %15 = sbr.rel (0) target = $region5
    $region4: #{classifier_forward.1} parent=1 // pred_region
      _
    $region5: #{classifier_forward.1} parent=1 // pred_fallthru
      _
    // Predicated region
    $region6: #{classifier_forward.1} parent=1 // pred_check
      _
    $region7: #{classifier_forward.1} parent=1 // pred_check_branch
      %17 = sbr.rel (0) target = $region9
    $region8: #{classifier_forward.1} parent=1 // pred_region
      %19 = vsyncadd [#allocation3], 0
      %s20 = sshll.u32 %s1, 4
      %s21 = int_to_ptr.hbm [resolvable:$true] %s20
      %s22 = sshll.u32 [#allocation2], 4
      %s23 = int_to_ptr.vmem [resolvable:$true] %s22
      %28 = dma.hbm_to_vmem [thread:$0]  %s21, 4096, %s23, [#allocation3], 128, 128, 8
    $region9: #{classifier_forward.1} parent=1 // pred_fallthru
      _
    // Predicated region
    $region10: #{classifier_forward.1} parent=1 // pred_check
      _
    $region11: #{classifier_forward.1} parent=1 // pred_check_branch
      %30 = sbr.rel (0) target = $region13
    $region12: #{classifier_forward.1} parent=1 // pred_region
      _
    $region13: #{classifier_forward.1} parent=1 // pred_fallthru
      _
    // Predicated region
    $region14: #{classifier_forward.1} parent=1 // pred_check
      _
    $region15: #{classifier_forward.1} parent=1 // pred_check_branch
      %32 = sbr.rel (0) target = $region17
    $region16: #{classifier_forward.1} parent=1 // pred_region
      %34 = vsyncadd [#allocation5], 0
      %s35 = sshll.u32 %s3, 4
      %s36 = int_to_ptr.hbm [resolvable:$true] %s35
      %s37 = sshll.u32 [#allocation4], 4
      %s38 = int_to_ptr.vmem [resolvable:$true] %s37
      %43 = dma.hbm_to_vmem [thread:$0]  %s36, 2048, %s38, [#allocation5], 64, 64, 4
    $region17: #{classifier_forward.1} parent=1 // pred_fallthru
      _
    // Predicated region
    $region18: #{classifier_forward.1} parent=1 // pred_check
      _
    $region19: #{classifier_forward.1} parent=1 // pred_check_branch
      %45 = sbr.rel (0) target = $region21
    $region20: #{classifier_forward.1} parent=1 // pred_region
      _
    $region21: #{classifier_forward.1} parent=1 // pred_fallthru
      _
    // Predicated region
    $region22: #{classifier_forward.1} parent=1 // pred_check
      _
    $region23: #{classifier_forward.1} parent=1 // pred_check_branch
      %47 = sbr.rel (0) target = $region25
    $region24: #{classifier_forward.1} parent=1 // pred_region
      _
    $region25: #{classifier_forward.1} parent=1 // pred_fallthru
      _
    // Predicated region
    $region26: #{classifier_forward.1} parent=1 // pred_check
      _
    $region27: #{classifier_forward.1} parent=1 // pred_check_branch
      %49 = sbr.rel (0) target = $region29
    $region28: #{classifier_forward.1} parent=1 // pred_region
      _
    $region29: #{classifier_forward.1} parent=1 // pred_fallthru
      _
    // Predicated region
    $region30: #{classifier_forward.1} parent=1 // pred_check
      _
    $region31: #{classifier_forward.1} parent=1 // pred_check_branch
      %51 = sbr.rel (0) target = $region33
    $region32: #{classifier_forward.1} parent=1 // pred_region
      %53 = dma.done [#allocation3], 4096
    $region33: #{classifier_forward.1} parent=1 // pred_fallthru
      _
    // Predicated region
    $region34: #{classifier_forward.1} parent=1 // pred_check
      _
    $region35: #{classifier_forward.1} parent=1 // pred_check_branch
      %55 = sbr.rel (0) target = $region37
    $region36: #{classifier_forward.1} parent=1 // pred_region
      %57 = dma.done [#allocation5], 2048
    $region37: #{classifier_forward.1} parent=1 // pred_fallthru
      _
    %v58 = vld [vmem:[%s0] sm:$0xff]
    %v59 = vld [vmem:[%s0 + $0x8] sm:$0xff]
    %v60 = vld [vmem:[%s0 + $0x10] sm:$0xff]
    %v61 = vld [vmem:[%s0 + $0x18] sm:$0xff]
    %v62 = vld [vmem:[%s0 + $0x20] sm:$0xff]
    %v63 = vld [vmem:[%s0 + $0x28] sm:$0xff]
    %v64 = vld [vmem:[%s0 + $0x30] sm:$0xff]
    %v65 = vld [vmem:[%s0 + $0x38] sm:$0xff]
    %v66 = vpack.c.bf16 %v60, %v58
    %v67 = vpack.c.bf16 %v61, %v59
    %v68 = vpack.c.bf16 %v64, %v62
    %v69 = vpack.c.bf16 %v65, %v63
    %v70 = vld [vmem:[#allocation2] sm:$0xff]
    %v71 = vld [vmem:[#allocation2 + $0x8] sm:$0xff]
    %v72 = vld [vmem:[#allocation2 + $0x10] sm:$0xff]
    %v73 = vld [vmem:[#allocation2 + $0x18] sm:$0xff]
    %v74 = vld [vmem:[#allocation2 + $0x20] sm:$0xff]
    %v75 = vld [vmem:[#allocation2 + $0x28] sm:$0xff]
    %v76 = vld [vmem:[#allocation2 + $0x30] sm:$0xff]
    %v77 = vld [vmem:[#allocation2 + $0x38] sm:$0xff]
    %v78 = vld [vmem:[#allocation2 + $0x40] sm:$0xff]
    %v79 = vld [vmem:[#allocation2 + $0x48] sm:$0xff]
    %v80 = vld [vmem:[#allocation2 + $0x50] sm:$0xff]
    %v81 = vld [vmem:[#allocation2 + $0x58] sm:$0xff]
    %v82 = vld [vmem:[#allocation2 + $0x60] sm:$0xff]
    %v83 = vld [vmem:[#allocation2 + $0x68] sm:$0xff]
    %v84 = vld [vmem:[#allocation2 + $0x70] sm:$0xff]
    %v85 = vld [vmem:[#allocation2 + $0x78] sm:$0xff]
    %v86 = vld [vmem:[#allocation2 + $0x80] sm:$0xff]
    %v87 = vld [vmem:[#allocation2 + $0x88] sm:$0xff]
    %v88 = vld [vmem:[#allocation2 + $0x90] sm:$0xff]
    %v89 = vld [vmem:[#allocation2 + $0x98] sm:$0xff]
    %v90 = vld [vmem:[#allocation2 + $0xa0] sm:$0xff]
    %v91 = vld [vmem:[#allocation2 + $0xa8] sm:$0xff]
    %v92 = vld [vmem:[#allocation2 + $0xb0] sm:$0xff]
    %v93 = vld [vmem:[#allocation2 + $0xb8] sm:$0xff]
    %v94 = vld [vmem:[#allocation2 + $0xc0] sm:$0xff]
    %v95 = vld [vmem:[#allocation2 + $0xc8] sm:$0xff]
    %v96 = vld [vmem:[#allocation2 + $0xd0] sm:$0xff]
    %v97 = vld [vmem:[#allocation2 + $0xd8] sm:$0xff]
    %v98 = vld [vmem:[#allocation2 + $0xe0] sm:$0xff]
    %v99 = vld [vmem:[#allocation2 + $0xe8] sm:$0xff]
    %v100 = vld [vmem:[#allocation2 + $0xf0] sm:$0xff]
    %v101 = vld [vmem:[#allocation2 + $0xf8] sm:$0xff]
    %v102 = vld [vmem:[%s2] sm:$0x3]
    %v104 = vperm.slane %v102, 0
    %v105 = vperm.slane %v102, 1
    %v140 = vunpack.c.l.b16 %v70
    %v141 = vunpack.c.h.b16 %v70
    %v142 = vunpack.c.l.b16 %v71
    %v143 = vunpack.c.h.b16 %v71
    %v144 = vunpack.c.l.b16 %v72
    %v145 = vunpack.c.h.b16 %v72
    %v146 = vunpack.c.l.b16 %v73
    %v147 = vunpack.c.h.b16 %v73
    %v148 = vunpack.c.l.b16 %v74
    %v149 = vunpack.c.h.b16 %v74
    %v150 = vunpack.c.l.b16 %v75
    %v151 = vunpack.c.h.b16 %v75
    %v152 = vunpack.c.l.b16 %v76
    %v153 = vunpack.c.h.b16 %v76
    %v154 = vunpack.c.l.b16 %v77
    %v155 = vunpack.c.h.b16 %v77
    %v156 = vunpack.c.l.b16 %v78
    %v157 = vunpack.c.h.b16 %v78
    %v158 = vunpack.c.l.b16 %v79
    %v159 = vunpack.c.h.b16 %v79
    %v160 = vunpack.c.l.b16 %v80
    %v161 = vunpack.c.h.b16 %v80
    %v162 = vunpack.c.l.b16 %v81
    %v163 = vunpack.c.h.b16 %v81
    %v164 = vunpack.c.l.b16 %v82
    %v165 = vunpack.c.h.b16 %v82
    %v166 = vunpack.c.l.b16 %v83
    %v167 = vunpack.c.h.b16 %v83
    %v168 = vunpack.c.l.b16 %v84
    %v169 = vunpack.c.h.b16 %v84
    %v170 = vunpack.c.l.b16 %v85
    %v171 = vunpack.c.h.b16 %v85
    %v172 = vunpack.c.l.b16 %v86
    %v173 = vunpack.c.h.b16 %v86
    %v174 = vunpack.c.l.b16 %v87
    %v175 = vunpack.c.h.b16 %v87
    %v176 = vunpack.c.l.b16 %v88
    %v177 = vunpack.c.h.b16 %v88
    %v178 = vunpack.c.l.b16 %v89
    %v179 = vunpack.c.h.b16 %v89
    %v180 = vunpack.c.l.b16 %v90
    %v181 = vunpack.c.h.b16 %v90
    %v182 = vunpack.c.l.b16 %v91
    %v183 = vunpack.c.h.b16 %v91
    %v184 = vunpack.c.l.b16 %v92
    %v185 = vunpack.c.h.b16 %v92
    %v186 = vunpack.c.l.b16 %v93
    %v187 = vunpack.c.h.b16 %v93
    %v188 = vunpack.c.l.b16 %v94
    %v189 = vunpack.c.h.b16 %v94
    %v190 = vunpack.c.l.b16 %v95
    %v191 = vunpack.c.h.b16 %v95
    %v192 = vunpack.c.l.b16 %v96
    %v193 = vunpack.c.h.b16 %v96
    %v194 = vunpack.c.l.b16 %v97
    %v195 = vunpack.c.h.b16 %v97
    %v196 = vunpack.c.l.b16 %v98
    %v197 = vunpack.c.h.b16 %v98
    %v198 = vunpack.c.l.b16 %v99
    %v199 = vunpack.c.h.b16 %v99
    %v200 = vunpack.c.l.b16 %v100
    %v201 = vunpack.c.h.b16 %v100
    %v202 = vunpack.c.l.b16 %v101
    %v203 = vunpack.c.h.b16 %v101
    %v204 = vpack.c.b16 %v142, %v140
    %v205 = vpack.c.b16 %v143, %v141
    %v206 = vpack.c.b16 %v146, %v144
    %v207 = vpack.c.b16 %v147, %v145
    %v208 = vpack.c.b16 %v150, %v148
    %v209 = vpack.c.b16 %v151, %v149
    %v210 = vpack.c.b16 %v154, %v152
    %v211 = vpack.c.b16 %v155, %v153
    %v212 = vpack.c.b16 %v158, %v156
    %v213 = vpack.c.b16 %v159, %v157
    %v214 = vpack.c.b16 %v162, %v160
    %v215 = vpack.c.b16 %v163, %v161
    %v216 = vpack.c.b16 %v166, %v164
    %v217 = vpack.c.b16 %v167, %v165
    %v218 = vpack.c.b16 %v170, %v168
    %v219 = vpack.c.b16 %v171, %v169
    %v220 = vpack.c.b16 %v174, %v172
    %v221 = vpack.c.b16 %v175, %v173
    %v222 = vpack.c.b16 %v178, %v176
    %v223 = vpack.c.b16 %v179, %v177
    %v224 = vpack.c.b16 %v182, %v180
    %v225 = vpack.c.b16 %v183, %v181
    %v226 = vpack.c.b16 %v186, %v184
    %v227 = vpack.c.b16 %v187, %v185
    %v228 = vpack.c.b16 %v190, %v188
    %v229 = vpack.c.b16 %v191, %v189
    %v230 = vpack.c.b16 %v194, %v192
    %v231 = vpack.c.b16 %v195, %v193
    %v232 = vpack.c.b16 %v198, %v196
    %v233 = vpack.c.b16 %v199, %v197
    %v234 = vpack.c.b16 %v202, %v200
    %v235 = vpack.c.b16 %v203, %v201
    %268 = vmatpush.bf16.msra.mxu0 %v218
    %269 = vmatpush.bf16.msra.mxu0 %v216
    %270 = vmatpush.bf16.msra.mxu0 %v214
    %271 = vmatpush.bf16.msra.mxu0 %v212
    %272 = vmatpush.bf16.msra.mxu0 %v210
    %273 = vmatpush.bf16.msra.mxu0 %v208
    %274 = vmatpush.bf16.msra.mxu0 %v206
    %275 = vmatpush.bf16.msra.mxu0 %v204
    %276 = vmatmul.bf16.gmra.mxu0 %v66
    %v277 = vpop.f32.mrf.mxu0
    %v278 = vadd.f32 %v104, %v277
    %v279 = vpop.f32.mrf.mxu0
    %v280 = vadd.f32 %v104, %v279
    %281 = vmatmul.bf16.gmra.mxu0 %v68
    %v282 = vpop.f32.mrf.mxu0
    %v283 = vadd.f32 %v104, %v282
    %v284 = vpop.f32.mrf.mxu0
    %v285 = vadd.f32 %v104, %v284
    %286 = vdwg.mxu0
    %287 = vmatpush.bf16.msra.mxu0 %v234
    %288 = vmatpush.bf16.msra.mxu0 %v232
    %289 = vmatpush.bf16.msra.mxu0 %v230
    %290 = vmatpush.bf16.msra.mxu0 %v228
    %291 = vmatpush.bf16.msra.mxu0 %v226
    %292 = vmatpush.bf16.msra.mxu0 %v224
    %293 = vmatpush.bf16.msra.mxu0 %v222
    %294 = vmatpush.bf16.msra.mxu0 %v220
    %295 = vmatmul.bf16.gmra.mxu0 %v67
    %v296 = vpop.f32.mrf.mxu0
    %v297 = vadd.f32 %v278, %v296
    %v298 = vpop.f32.mrf.mxu0
    %v299 = vadd.f32 %v280, %v298
    %300 = vmatmul.bf16.gmra.mxu0 %v69
    %v301 = vpop.f32.mrf.mxu0
    %v302 = vadd.f32 %v283, %v301
    %v303 = vpop.f32.mrf.mxu0
    %v304 = vadd.f32 %v285, %v303
    %305 = vdwg.mxu0
    %306 = vmatpush.bf16.msra.mxu0 %v219
    %307 = vmatpush.bf16.msra.mxu0 %v217
    %308 = vmatpush.bf16.msra.mxu0 %v215
    %309 = vmatpush.bf16.msra.mxu0 %v213
    %310 = vmatpush.bf16.msra.mxu0 %v211
    %311 = vmatpush.bf16.msra.mxu0 %v209
    %312 = vmatpush.bf16.msra.mxu0 %v207
    %313 = vmatpush.bf16.msra.mxu0 %v205
    %314 = vmatmul.bf16.gmra.mxu0 %v66
    %v315 = vpop.f32.mrf.mxu0
    %v316 = vadd.f32 %v105, %v315
    %v317 = vpop.f32.mrf.mxu0
    %v318 = vadd.f32 %v105, %v317
    %319 = vmatmul.bf16.gmra.mxu0 %v68
    %v320 = vpop.f32.mrf.mxu0
    %v321 = vadd.f32 %v105, %v320
    %v322 = vpop.f32.mrf.mxu0
    %v323 = vadd.f32 %v105, %v322
    %324 = vdwg.mxu0
    %325 = vmatpush.bf16.msra.mxu0 %v235
    %326 = vmatpush.bf16.msra.mxu0 %v233
    %327 = vmatpush.bf16.msra.mxu0 %v231
    %328 = vmatpush.bf16.msra.mxu0 %v229
    %329 = vmatpush.bf16.msra.mxu0 %v227
    %330 = vmatpush.bf16.msra.mxu0 %v225
    %331 = vmatpush.bf16.msra.mxu0 %v223
    %332 = vmatpush.bf16.msra.mxu0 %v221
    %333 = vmatmul.bf16.gmra.mxu0 %v67
    %v334 = vpop.f32.mrf.mxu0
    %v335 = vadd.f32 %v316, %v334
    %v336 = vpop.f32.mrf.mxu0
    %v337 = vadd.f32 %v318, %v336
    %338 = vmatmul.bf16.gmra.mxu0 %v69
    %v339 = vpop.f32.mrf.mxu0
    %v340 = vadd.f32 %v321, %v339
    %v341 = vpop.f32.mrf.mxu0
    %v342 = vadd.f32 %v323, %v341
    %343 = vdwg.mxu0
    %v344 = vmax.f32 %v297, 0.0
    %v345 = vmax.f32 %v335, 0.0
    %v346 = vmax.f32 %v299, 0.0
    %v347 = vmax.f32 %v337, 0.0
    %v348 = vmax.f32 %v302, 0.0
    %v349 = vmax.f32 %v340, 0.0
    %v350 = vmax.f32 %v304, 0.0
    %v351 = vmax.f32 %v342, 0.0
    %v352 = vpack.c.bf16 %v346, %v344
    %v353 = vpack.c.bf16 %v347, %v345
    %v354 = vpack.c.bf16 %v350, %v348
    %v355 = vpack.c.bf16 %v351, %v349
    %v356 = vld [vmem:[#allocation4] sm:$0xf]
    %v357 = vld [vmem:[#allocation4 + $0x4] sm:$0xf]
    %v358 = vld [vmem:[#allocation4 + $0x8] sm:$0xf]
    %v359 = vld [vmem:[#allocation4 + $0xc] sm:$0xf]
    %v360 = vld [vmem:[#allocation4 + $0x10] sm:$0xf]
    %v361 = vld [vmem:[#allocation4 + $0x14] sm:$0xf]
    %v362 = vld [vmem:[#allocation4 + $0x18] sm:$0xf]
    %v363 = vld [vmem:[#allocation4 + $0x1c] sm:$0xf]
    %v364 = vld [vmem:[#allocation4 + $0x20] sm:$0xf]
    %v365 = vld [vmem:[#allocation4 + $0x24] sm:$0xf]
    %v366 = vld [vmem:[#allocation4 + $0x28] sm:$0xf]
    %v367 = vld [vmem:[#allocation4 + $0x2c] sm:$0xf]
    %v368 = vld [vmem:[#allocation4 + $0x30] sm:$0xf]
    %v369 = vld [vmem:[#allocation4 + $0x34] sm:$0xf]
    %v370 = vld [vmem:[#allocation4 + $0x38] sm:$0xf]
    %v371 = vld [vmem:[#allocation4 + $0x3c] sm:$0xf]
    %v372 = vld [vmem:[#allocation4 + $0x40] sm:$0xf]
    %v373 = vld [vmem:[#allocation4 + $0x44] sm:$0xf]
    %v374 = vld [vmem:[#allocation4 + $0x48] sm:$0xf]
    %v375 = vld [vmem:[#allocation4 + $0x4c] sm:$0xf]
    %v376 = vld [vmem:[#allocation4 + $0x50] sm:$0xf]
    %v377 = vld [vmem:[#allocation4 + $0x54] sm:$0xf]
    %v378 = vld [vmem:[#allocation4 + $0x58] sm:$0xf]
    %v379 = vld [vmem:[#allocation4 + $0x5c] sm:$0xf]
    %v380 = vld [vmem:[#allocation4 + $0x60] sm:$0xf]
    %v381 = vld [vmem:[#allocation4 + $0x64] sm:$0xf]
    %v382 = vld [vmem:[#allocation4 + $0x68] sm:$0xf]
    %v383 = vld [vmem:[#allocation4 + $0x6c] sm:$0xf]
    %v384 = vld [vmem:[#allocation4 + $0x70] sm:$0xf]
    %v385 = vld [vmem:[#allocation4 + $0x74] sm:$0xf]
    %v386 = vld [vmem:[#allocation4 + $0x78] sm:$0xf]
    %v387 = vld [vmem:[#allocation4 + $0x7c] sm:$0xf]
    %v388 = vld [vmem:[%s4] sm:$0x1]
    %v390 = vperm.slane %v388, 0
    %v424 = vunpack.c.l.b16 %v356
    %v425 = vunpack.c.l.b16 %v357
    %v426 = vunpack.c.l.b16 %v358
    %v427 = vunpack.c.l.b16 %v359
    %v428 = vunpack.c.l.b16 %v360
    %v429 = vunpack.c.l.b16 %v361
    %v430 = vunpack.c.l.b16 %v362
    %v431 = vunpack.c.l.b16 %v363
    %v432 = vunpack.c.l.b16 %v364
    %v433 = vunpack.c.l.b16 %v365
    %v434 = vunpack.c.l.b16 %v366
    %v435 = vunpack.c.l.b16 %v367
    %v436 = vunpack.c.l.b16 %v368
    %v437 = vunpack.c.l.b16 %v369
    %v438 = vunpack.c.l.b16 %v370
    %v439 = vunpack.c.l.b16 %v371
    %v440 = vunpack.c.l.b16 %v372
    %v441 = vunpack.c.l.b16 %v373
    %v442 = vunpack.c.l.b16 %v374
    %v443 = vunpack.c.l.b16 %v375
    %v444 = vunpack.c.l.b16 %v376
    %v445 = vunpack.c.l.b16 %v377
    %v446 = vunpack.c.l.b16 %v378
    %v447 = vunpack.c.l.b16 %v379
    %v448 = vunpack.c.l.b16 %v380
    %v449 = vunpack.c.l.b16 %v381
    %v450 = vunpack.c.l.b16 %v382
    %v451 = vunpack.c.l.b16 %v383
    %v452 = vunpack.c.l.b16 %v384
    %v453 = vunpack.c.l.b16 %v385
    %v454 = vunpack.c.l.b16 %v386
    %v455 = vunpack.c.l.b16 %v387
    %v456 = vpack.c.b16 %v425, %v424
    %v457 = vpack.c.b16 %v427, %v426
    %v458 = vpack.c.b16 %v429, %v428
    %v459 = vpack.c.b16 %v431, %v430
    %v460 = vpack.c.b16 %v433, %v432
    %v461 = vpack.c.b16 %v435, %v434
    %v462 = vpack.c.b16 %v437, %v436
    %v463 = vpack.c.b16 %v439, %v438
    %v464 = vpack.c.b16 %v441, %v440
    %v465 = vpack.c.b16 %v443, %v442
    %v466 = vpack.c.b16 %v445, %v444
    %v467 = vpack.c.b16 %v447, %v446
    %v468 = vpack.c.b16 %v449, %v448
    %v469 = vpack.c.b16 %v451, %v450
    %v470 = vpack.c.b16 %v453, %v452
    %v471 = vpack.c.b16 %v455, %v454
    %488 = vmatpush.bf16.msra.mxu0 %v463
    %489 = vmatpush.bf16.msra.mxu0 %v462
    %490 = vmatpush.bf16.msra.mxu0 %v461
    %491 = vmatpush.bf16.msra.mxu0 %v460
    %492 = vmatpush.bf16.msra.mxu0 %v459
    %493 = vmatpush.bf16.msra.mxu0 %v458
    %494 = vmatpush.bf16.msra.mxu0 %v457
    %495 = vmatpush.bf16.msra.mxu0 %v456
    %496 = vmatmul.bf16.gmra.mxu0 %v352
    %v497 = vpop.f32.mrf.mxu0
    %v498 = vadd.f32 %v390, %v497
    %v499 = vpop.f32.mrf.mxu0
    %v500 = vadd.f32 %v390, %v499
    %501 = vmatmul.bf16.gmra.mxu0 %v354
    %v502 = vpop.f32.mrf.mxu0
    %v503 = vadd.f32 %v390, %v502
    %v504 = vpop.f32.mrf.mxu0
    %v505 = vadd.f32 %v390, %v504
    %506 = vdwg.mxu0
    %507 = vmatpush.bf16.msra.mxu0 %v471
    %508 = vmatpush.bf16.msra.mxu0 %v470
    %509 = vmatpush.bf16.msra.mxu0 %v469
    %510 = vmatpush.bf16.msra.mxu0 %v468
    %511 = vmatpush.bf16.msra.mxu0 %v467
    %512 = vmatpush.bf16.msra.mxu0 %v466
    %513 = vmatpush.bf16.msra.mxu0 %v465
    %514 = vmatpush.bf16.msra.mxu0 %v464
    %515 = vmatmul.bf16.gmra.mxu0 %v353
    %v516 = vpop.f32.mrf.mxu0
    %v517 = vadd.f32 %v498, %v516
    %v518 = vpop.f32.mrf.mxu0
    %v519 = vadd.f32 %v500, %v518
    %520 = vmatmul.bf16.gmra.mxu0 %v355
    %v521 = vpop.f32.mrf.mxu0
    %v522 = vadd.f32 %v503, %v521
    %v523 = vpop.f32.mrf.mxu0
    %v524 = vadd.f32 %v505, %v523
    %525 = vdwg.mxu0
    %v526 = vmax.f32 %v517, 0.0
    %v527 = vmax.f32 %v519, 0.0
    %v528 = vmax.f32 %v522, 0.0
    %v529 = vmax.f32 %v524, 0.0
    %v530 = vpack.c.bf16 %v527, %v526
    %v531 = vpack.c.bf16 %v529, %v528
    %v532 = vld [vmem:[%s5] sm:$0xf]
    %v533 = vld [vmem:[%s5 + $0x4] sm:$0xf]
    %v534 = vld [vmem:[%s5 + $0x8] sm:$0xf]
    %v535 = vld [vmem:[%s5 + $0xc] sm:$0xf]
    %v536 = vld [vmem:[%s5 + $0x10] sm:$0xf]
    %v537 = vld [vmem:[%s5 + $0x14] sm:$0xf]
    %v538 = vld [vmem:[%s5 + $0x18] sm:$0xf]
    %v539 = vld [vmem:[%s5 + $0x1c] sm:$0xf]
    %v540 = vld [vmem:[%s5 + $0x20] sm:$0xf]
    %v541 = vld [vmem:[%s5 + $0x24] sm:$0xf]
    %v542 = vld [vmem:[%s5 + $0x28] sm:$0xf]
    %v543 = vld [vmem:[%s5 + $0x2c] sm:$0xf]
    %v544 = vld [vmem:[%s5 + $0x30] sm:$0xf]
    %v545 = vld [vmem:[%s5 + $0x34] sm:$0xf]
    %v546 = vld [vmem:[%s5 + $0x38] sm:$0xf]
    %v547 = vld [vmem:[%s5 + $0x3c] sm:$0xf]
    %v548 = vld [vmem:[%s6] sm:$0x1]
    %v550 = vperm.slane %v548, 0
    %v568 = vunpack.c.l.b16 %v532
    %v569 = vunpack.c.l.b16 %v533
    %v570 = vunpack.c.l.b16 %v534
    %v571 = vunpack.c.l.b16 %v535
    %v572 = vunpack.c.l.b16 %v536
    %v573 = vunpack.c.l.b16 %v537
    %v574 = vunpack.c.l.b16 %v538
    %v575 = vunpack.c.l.b16 %v539
    %v576 = vunpack.c.l.b16 %v540
    %v577 = vunpack.c.l.b16 %v541
    %v578 = vunpack.c.l.b16 %v542
    %v579 = vunpack.c.l.b16 %v543
    %v580 = vunpack.c.l.b16 %v544
    %v581 = vunpack.c.l.b16 %v545
    %v582 = vunpack.c.l.b16 %v546
    %v583 = vunpack.c.l.b16 %v547
    %v584 = vpack.c.b16 %v569, %v568
    %v585 = vpack.c.b16 %v571, %v570
    %v586 = vpack.c.b16 %v573, %v572
    %v587 = vpack.c.b16 %v575, %v574
    %v588 = vpack.c.b16 %v577, %v576
    %v589 = vpack.c.b16 %v579, %v578
    %v590 = vpack.c.b16 %v581, %v580
    %v591 = vpack.c.b16 %v583, %v582
    %600 = vmatpush.bf16.msra.mxu0 %v591
    %601 = vmatpush.bf16.msra.mxu0 %v590
    %602 = vmatpush.bf16.msra.mxu0 %v589
    %603 = vmatpush.bf16.msra.mxu0 %v588
    %604 = vmatpush.bf16.msra.mxu0 %v587
    %605 = vmatpush.bf16.msra.mxu0 %v586
    %606 = vmatpush.bf16.msra.mxu0 %v585
    %607 = vmatpush.bf16.msra.mxu0 %v584
    %608 = vmatmul.bf16.gmra.mxu0 %v530
    %v609 = vpop.f32.mrf.mxu0
    %v610 = vadd.f32 %v550, %v609
    %v611 = vpop.f32.mrf.mxu0
    %v612 = vadd.f32 %v550, %v611
    %613 = vmatmul.bf16.gmra.mxu0 %v531
    %v614 = vpop.f32.mrf.mxu0
    %v615 = vadd.f32 %v550, %v614
    %v616 = vpop.f32.mrf.mxu0
    %v617 = vadd.f32 %v550, %v616
    %618 = vdwg.mxu0
    %v619 = vxor.u32 %v610, 2147483648
    %v620 = vxor.u32 %v612, 2147483648
    %v621 = vxor.u32 %v615, 2147483648
    %v622 = vxor.u32 %v617, 2147483648
    %v623 = vmul.f32 %v619, 1.442695
    %v624 = vpow.pop %v623
    %v625 = vmul.f32 %v620, 1.442695
    %v626 = vpow.pop %v625
    %v627 = vmul.f32 %v621, 1.442695
    %v628 = vpow.pop %v627
    %v629 = vmul.f32 %v622, 1.442695
    %v630 = vpow.pop %v629
    %v631 = vadd.f32 %v624, 1.0
    %v632 = vadd.f32 %v626, 1.0
    %v633 = vadd.f32 %v628, 1.0
    %v634 = vadd.f32 %v630, 1.0
    %v635 = vrcp.pop %v631
    %v636 = vmul.f32 %v631, %v635
    %v637 = vsub.f32 1.0, %v636
    %v638 = vmul.f32 %v635, %v637
    %v639 = vadd.f32 %v635, %v638
    %vm640 = vweird.f32 %v631
    %vm641 = vweird.f32 %v635
    %vm642 = vmor %vm640, %vm641
    %v643 = vsel %vm642, %v635, %v639
    %v644 = vand.u32 2147483647, %v631
    %vm645 = vcmp.eq.f32.partialorder %v644, 8.507059e+37
    %v646 = vand.u32 %v631, 2147483648
    %v647 = vor.u32 1.1754944e-38, %v646
    %v648 = vsel %vm645, %v647, %v643
    %v649 = vmul.f32 1.0, %v648
    %v650 = vrcp.pop %v632
    %v651 = vmul.f32 %v632, %v650
    %v652 = vsub.f32 1.0, %v651
    %v653 = vmul.f32 %v650, %v652
    %v654 = vadd.f32 %v650, %v653
    %vm655 = vweird.f32 %v632
    %vm656 = vweird.f32 %v650
    %vm657 = vmor %vm655, %vm656
    %v658 = vsel %vm657, %v650, %v654
    %v659 = vand.u32 2147483647, %v632
    %vm660 = vcmp.eq.f32.partialorder %v659, 8.507059e+37
    %v661 = vand.u32 %v632, 2147483648
    %v662 = vor.u32 1.1754944e-38, %v661
    %v663 = vsel %vm660, %v662, %v658
    %v664 = vmul.f32 1.0, %v663
    %v665 = vrcp.pop %v633
    %v666 = vmul.f32 %v633, %v665
    %v667 = vsub.f32 1.0, %v666
    %v668 = vmul.f32 %v665, %v667
    %v669 = vadd.f32 %v665, %v668
    %vm670 = vweird.f32 %v633
    %vm671 = vweird.f32 %v665
    %vm672 = vmor %vm670, %vm671
    %v673 = vsel %vm672, %v665, %v669
    %v674 = vand.u32 2147483647, %v633
    %vm675 = vcmp.eq.f32.partialorder %v674, 8.507059e+37
    %v676 = vand.u32 %v633, 2147483648
    %v677 = vor.u32 1.1754944e-38, %v676
    %v678 = vsel %vm675, %v677, %v673
    %v679 = vmul.f32 1.0, %v678
    %v680 = vrcp.pop %v634
    %v681 = vmul.f32 %v634, %v680
    %v682 = vsub.f32 1.0, %v681
    %v683 = vmul.f32 %v680, %v682
    %v684 = vadd.f32 %v680, %v683
    %vm685 = vweird.f32 %v634
    %vm686 = vweird.f32 %v680
    %vm687 = vmor %vm685, %vm686
    %v688 = vsel %vm687, %v680, %v684
    %v689 = vand.u32 2147483647, %v634
    %vm690 = vcmp.eq.f32.partialorder %v689, 8.507059e+37
    %v691 = vand.u32 %v634, 2147483648
    %v692 = vor.u32 1.1754944e-38, %v691
    %v693 = vsel %vm690, %v692, %v688
    %v694 = vmul.f32 1.0, %v693
    %v695 = vpack.c.bf16 %v649, %v649
    %v696 = vpack.c.bf16 %v664, %v664
    %v697 = vpack.c.bf16 %v679, %v679
    %v698 = vpack.c.bf16 %v694, %v694
    %699 = vst [vmem:[%s7] sm:$0xf] %v695
    %700 = vst [vmem:[%s7 + $0x4] sm:$0xf] %v696
    %701 = vst [vmem:[%s7 + $0x8] sm:$0xf] %v697
    %702 = vst [vmem:[%s7 + $0xc] sm:$0xf] %v698
    // Predicated region
    $region38: #{classifier_forward.1} parent=1 // pred_check
      _
    $region39: #{classifier_forward.1} parent=1 // pred_check_branch
      %704 = sbr.rel (0) target = $region41
    $region40: #{classifier_forward.1} parent=1 // pred_region
      _
    $region41: #{classifier_forward.1} parent=1 // pred_fallthru
      _
    // Predicated region
    $region42: #{classifier_forward.1} parent=1 // pred_check
      _
    $region43: #{classifier_forward.1} parent=1 // pred_check_branch
      %706 = sbr.rel (0) target = $region45
    $region44: #{classifier_forward.1} parent=1 // pred_region
      _
    $region45: #{classifier_forward.1} parent=1 // pred_fallthru
      _
    %707 = vsyncpa [#allocation3], 1
    %708 = vsyncpa [#allocation5], 1

</llo_original>
